<compile_context>
chip_gen: v5e
topology: v5e:2x2
jax: 0.10.0
libtpu: 0.0.40
codegen_flags: <defaults>
</compile_context>

<pallas_src>
import jax
import jax.numpy as jnp
from jax.experimental import pallas as pl
from jax.experimental.pallas import tpu as pltpu


def _round_up(x: int, m: int) -> int:
    return ((x + m - 1) // m) * m


def _gated_fusion_kernel(w_ref, b_ref, gd_ref, ga_ref, o_ref):
    # w_ref: SMEM (2,)  -> [w_diff, w_adv] of the Linear(2,1) weight
    # b_ref: SMEM (1,)  -> bias
    # gd_ref / ga_ref / o_ref: VMEM (tile_b, tile_n)
    w_diff = w_ref[0]
    w_adv = w_ref[1]
    bias = b_ref[0]

    # Gate math always in f32 (v5e has no bf16 VPU/EUP path; avoids sigmoid
    # saturation error for bf16 inputs).
    gd = gd_ref[...].astype(jnp.float32)
    ga = ga_ref[...].astype(jnp.float32)

    # Linear(2,1) over concat([gd, ga], -1) == elementwise affine.
    z = gd * w_diff + ga * w_adv + bias
    # Divide-free sigmoid on the EUP slot: sigmoid(z) = 0.5*tanh(z/2) + 0.5.
    g = 0.5 * jnp.tanh(0.5 * z) + 0.5

    # FMA-form blend: g*gd + (1-g)*ga == ga + g*(gd - ga).
    o_ref[...] = (ga + g * (gd - ga)).astype(o_ref.dtype)


def simple_gated_fusion(grad_diff, grad_adv, weight, bias, *, num_nodes, var_dim,
                        target_block_bytes=2 * 1024 * 1024,
                        donate_grad_diff=False):
    """grad_diff, grad_adv: (B, num_nodes*var_dim). weight: (1, 2), bias: (1,)."""
    assert var_dim == 1, "nn.Linear(2,1) on cat(..., dim=-1) requires var_dim == 1"
    B, ND = grad_diff.shape
    assert ND == num_nodes * var_dim
    assert grad_adv.shape == (B, ND)
    out_dtype = grad_diff.dtype
    itemsize = jnp.dtype(out_dtype).itemsize
    # Sublane tile unit must match dtype packing (f32: 8, bf16: 16, int8/fp8: 32).
    sub_unit = {4: 8, 2: 16, 1: 32}.get(itemsize, 8)

    # ---- Tile selection (no padding of the arrays; edge blocks are masked) ----
    # Lane tile: full row if it fits, else a lane-dense multiple of 128.
    max_cols = 1024
    tile_n = ND if ND <= max_cols else max_cols

    # Sublane tile: fill ~target_block_bytes per stream per pipeline buffer.
    target_elems = max(1, target_block_bytes // itemsize)
    budget_rows = max(1, target_elems // tile_n)
    if B <= budget_rows:
        tile_b = B                                        # full dim -> always legal
    else:
        tile_b = min(max(sub_unit, (budget_rows // sub_unit) * sub_unit), B)

    grid_b, grid_n = pl.cdiv(B, tile_b), pl.cdiv(ND, tile_n)
    # v7x megacore: ensure >= 2 grid steps on non-tiny problems so the
    # "parallel" axes can shard across both TensorCores.
    if grid_b * grid_n < 2:
        if B >= 2 * sub_unit:
            tile_b = _round_up(pl.cdiv(B, 2), sub_unit)
        elif ND >= 2 * 128:
            tile_n = _round_up(pl.cdiv(ND, 2), 128)
        grid_b, grid_n = pl.cdiv(B, tile_b), pl.cdiv(ND, tile_n)

    w_flat = weight.reshape(2).astype(jnp.float32)        # [w_diff, w_adv]
    b_flat = bias.reshape(1).astype(jnp.float32)

    extra_kwargs = {}
    if donate_grad_diff:
        # Reuse the grad_diff HBM slab for the output (no bandwidth change,
        # saves one full-size allocation). Off by default so the caller's
        # grad_diff stays valid after the call.
        extra_kwargs["input_output_aliases"] = {2: 0}

    out = pl.pallas_call(
        _gated_fusion_kernel,
        out_shape=jax.ShapeDtypeStruct((B, ND), out_dtype),
        grid=(grid_b, grid_n),
        in_specs=[
            pl.BlockSpec(memory_space=pltpu.MemorySpace.SMEM),   # weight scalars
            pl.BlockSpec(memory_space=pltpu.MemorySpace.SMEM),   # bias scalar
            pl.BlockSpec((tile_b, tile_n), lambda i, j: (i, j)),  # grad_diff tile
            pl.BlockSpec((tile_b, tile_n), lambda i, j: (i, j)),  # grad_adv tile
        ],
        out_specs=pl.BlockSpec((tile_b, tile_n), lambda i, j: (i, j)),
        compiler_params=pltpu.CompilerParams(
            dimension_semantics=("parallel", "parallel"),
            vmem_limit_bytes=32 * 1024 * 1024),
        **extra_kwargs,
    )(w_flat, b_flat, grad_diff, grad_adv)
    return out


def _reference(grad_diff, grad_adv, weight, bias, num_nodes, var_dim):
    B = grad_diff.shape[0]
    gd = grad_diff.reshape(B, num_nodes, var_dim)
    ga = grad_adv.reshape(B, num_nodes, var_dim)
    concat = jnp.concatenate([gd, ga], axis=-1)            # (B, N, 2)
    g = jax.nn.sigmoid(concat @ weight.T + bias)           # (B, N, 1)
    out = g * gd + (1.0 - g) * ga
    return out.reshape(B, num_nodes * var_dim)


if __name__ == "__main__":
    key = jax.random.PRNGKey(0)
    k_gd, k_ga, k_w, k_b = jax.random.split(key, 4)

    # Deterministic init mimicking nn.Linear(2, 1): U(-1/sqrt(2), 1/sqrt(2))
    bound = 1.0 / jnp.sqrt(2.0)
    weight = jax.random.uniform(k_w, (1, 2), minval=-bound, maxval=bound,
                                dtype=jnp.float32)
    bias = jax.random.uniform(k_b, (1,), minval=-bound, maxval=bound,
                              dtype=jnp.float32)

    # Case 1: lane-aligned shape (B=2, num_nodes=128, var_dim=1).
    num_nodes, var_dim, B = 128, 1, 2
    ND = num_nodes * var_dim
    grad_diff = jax.random.normal(k_gd, (B, ND), dtype=jnp.float32)
    grad_adv = jax.random.normal(k_ga, (B, ND), dtype=jnp.float32)
    out = simple_gated_fusion(grad_diff, grad_adv, weight, bias,
                              num_nodes=num_nodes, var_dim=var_dim)
    out = jax.block_until_ready(out)
    ref = _reference(grad_diff, grad_adv, weight, bias, num_nodes, var_dim)
    assert out.shape == (B, ND)
    assert jnp.allclose(out, ref, atol=1e-5, rtol=1e-5), "mismatch (case 1)"

    # Case 2: non-128-aligned lanes (exercises the full-row block path).
    num_nodes2, B2 = 200, 3
    ND2 = num_nodes2 * var_dim
    k_gd2, k_ga2 = jax.random.split(k_gd, 2)
    grad_diff2 = jax.random.normal(k_gd2, (B2, ND2), dtype=jnp.float32)
    grad_adv2 = jax.random.normal(k_ga2, (B2, ND2), dtype=jnp.float32)
    out2 = simple_gated_fusion(grad_diff2, grad_adv2, weight, bias,
                               num_nodes=num_nodes2, var_dim=var_dim)
    out2 = jax.block_until_ready(out2)
    ref2 = _reference(grad_diff2, grad_adv2, weight, bias, num_nodes2, var_dim)
    assert out2.shape == (B2, ND2)
    assert jnp.allclose(out2, ref2, atol=1e-5, rtol=1e-5), "mismatch (case 2)"

    # Case 3: larger batch -> megacore split on the batch axis + masked partial
    # edge block (B=50 split into tiles of 32 rows).
    num_nodes3, B3 = 300, 50
    ND3 = num_nodes3 * var_dim
    k_gd3, k_ga3 = jax.random.split(k_ga, 2)
    grad_diff3 = jax.random.normal(k_gd3, (B3, ND3), dtype=jnp.float32)
    grad_adv3 = jax.random.normal(k_ga3, (B3, ND3), dtype=jnp.float32)
    out3 = simple_gated_fusion(grad_diff3, grad_adv3, weight, bias,
                               num_nodes=num_nodes3, var_dim=var_dim)
    out3 = jax.block_until_ready(out3)
    ref3 = _reference(grad_diff3, grad_adv3, weight, bias, num_nodes3, var_dim)
    assert out3.shape == (B3, ND3)
    assert jnp.allclose(out3, ref3, atol=1e-5, rtol=1e-5), "mismatch (case 3)"

    print("KERNEL_OK")
</pallas_src>

<mosaic_0001>
module attributes {stable_mosaic.version = 11 : i64} {
  func.func @_gated_fusion_kernel(%arg0: i32, %arg1: i32, %arg2: memref<2xf32, #tpu.memory_space<smem>>, %arg3: memref<1xf32, #tpu.memory_space<smem>>, %arg4: memref<2x128xf32, #tpu.memory_space<vmem>>, %arg5: memref<2x128xf32, #tpu.memory_space<vmem>>, %arg6: memref<2x128xf32, #tpu.memory_space<vmem>>) attributes {dimension_semantics = [#tpu.dimension_semantics<parallel>, #tpu.dimension_semantics<parallel>], iteration_bounds = array<i64: 1, 1>, scalar_prefetch = 0 : i64, scratch_operands = 0 : i64, tpu.core_type = #tpu.core_type<tc>, window_params = [{transform_indices = @transform_0, window_bounds = array<i64: 2>}, {transform_indices = @transform_1, window_bounds = array<i64: 1>}, {transform_indices = @transform_2, window_bounds = array<i64: 2, 128>}, {transform_indices = @transform_3, window_bounds = array<i64: 2, 128>}, {transform_indices = @transform_4, window_bounds = array<i64: 2, 128>}]} {
    %c0 = arith.constant 0 : index
    %0 = memref.load %arg2[%c0] : memref<2xf32, #tpu.memory_space<smem>>
    %c1 = arith.constant 1 : index
    %1 = memref.load %arg2[%c1] : memref<2xf32, #tpu.memory_space<smem>>
    %c0_0 = arith.constant 0 : index
    %2 = memref.load %arg3[%c0_0] : memref<1xf32, #tpu.memory_space<smem>>
    %c0_1 = arith.constant 0 : index
    %c0_2 = arith.constant 0 : index
    %3 = vector.load %arg4[%c0_1, %c0_2] : memref<2x128xf32, #tpu.memory_space<vmem>>, vector<2x128xf32>
    %c0_3 = arith.constant 0 : index
    %c0_4 = arith.constant 0 : index
    %4 = vector.load %arg5[%c0_3, %c0_4] : memref<2x128xf32, #tpu.memory_space<vmem>>, vector<2x128xf32>
    %5 = vector.broadcast %0 : f32 to vector<2x128xf32>
    %6 = arith.mulf %3, %5 : vector<2x128xf32>
    %7 = vector.broadcast %1 : f32 to vector<2x128xf32>
    %8 = arith.mulf %4, %7 : vector<2x128xf32>
    %9 = arith.addf %6, %8 : vector<2x128xf32>
    %10 = vector.broadcast %2 : f32 to vector<2x128xf32>
    %11 = arith.addf %9, %10 : vector<2x128xf32>
    %cst = arith.constant 5.000000e-01 : f32
    %12 = vector.broadcast %cst : f32 to vector<2x128xf32>
    %13 = arith.mulf %12, %11 : vector<2x128xf32>
    %14 = math.tanh %13 : vector<2x128xf32>
    %cst_5 = arith.constant 5.000000e-01 : f32
    %15 = vector.broadcast %cst_5 : f32 to vector<2x128xf32>
    %16 = arith.mulf %15, %14 : vector<2x128xf32>
    %cst_6 = arith.constant 5.000000e-01 : f32
    %17 = vector.broadcast %cst_6 : f32 to vector<2x128xf32>
    %18 = arith.addf %16, %17 : vector<2x128xf32>
    %19 = arith.subf %3, %4 : vector<2x128xf32>
    %20 = arith.mulf %18, %19 : vector<2x128xf32>
    %21 = arith.addf %4, %20 : vector<2x128xf32>
    %c0_7 = arith.constant 0 : index
    %c0_8 = arith.constant 0 : index
    %22 = vector.load %arg6[%c0_7, %c0_8] : memref<2x128xf32, #tpu.memory_space<vmem>>, vector<2x128xf32>
    tpu.vector_store %arg6[%c0_7, %c0_8], %21 {strides = array<i32>} : memref<2x128xf32, #tpu.memory_space<vmem>>, vector<2x128xf32>,
    return
  }
  func.func @transform_0(%arg0: i32, %arg1: i32) -> i32 {
    %c0_i32 = arith.constant 0 : i32
    %c0_i32_0 = arith.constant 0 : i32
    return %c0_i32 : i32
  }
  func.func @transform_1(%arg0: i32, %arg1: i32) -> i32 {
    %c0_i32 = arith.constant 0 : i32
    %c0_i32_0 = arith.constant 0 : i32
    return %c0_i32 : i32
  }
  func.func @transform_2(%arg0: i32, %arg1: i32) -> (i32, i32) {
    %c0_i32 = arith.constant 0 : i32
    return %arg0, %arg1 : i32, i32
  }
  func.func @transform_3(%arg0: i32, %arg1: i32) -> (i32, i32) {
    %c0_i32 = arith.constant 0 : i32
    return %arg0, %arg1 : i32, i32
  }
  func.func @transform_4(%arg0: i32, %arg1: i32) -> (i32, i32) {
    %c0_i32 = arith.constant 0 : i32
    return %arg0, %arg1 : i32, i32
  }
}

</mosaic_0001>

<llo_original>
// kernel: tpu_custom_call.1
$region0: #{tpu_custom_call.1}
  #allocation0 [shape = 'u32[]', space=smem, size = 0x4, offset = 0x4, fixed_abs, tag = 'smem constant byte address 0x4 - core index']
  #allocation1 [shape = 'u32[72,128]{1,0:T(1,128)}', space=vmem, size = 0x9000, scoped, tag = 'internal scratch']
  #allocation2 [shape = 'f32[1]{0:T(128)S(6)}', space=smem, size = 0x200, scoped, tag = 'scoped memory for tpu_custom_call.1']
  %s0 = inlined_call_operand.hbm [shape: f32[2], index: 0, kind: input, shape index: {}]
  %s1 = inlined_call_operand.<no memory space> [shape: f32[1], index: 1, kind: input, shape index: {}]
  %s2 = inlined_call_operand.vmem [shape: f32[2,128], index: 2, kind: input, shape index: {}]
  %s3 = inlined_call_operand.hbm [shape: f32[2,128], index: 3, kind: input, shape index: {}]
  %s4 = inlined_call_operand.hbm [shape: f32[2,128], index: 4, kind: output, shape index: {}]
  %s5 = sld [smem:[#allocation0]]
  $region34: #{tpu_custom_call.1} parent=0
    _
  %s7 = ssub.s32 1, %s5
  %s8 = scalar_select 0, %s7, %s5
  %9 = sst [smem:[#allocation2]] %s1
  $region1: #{tpu_custom_call.1} parent=0
    #allocation3 [shape = 'u8[512]{0}', space=smem, size = 0x200, scoped, tag = 'input window, operand 0, single buffered']
    #allocation4 [shape = 's32[1]{0}', space=sflag, size = 0x4, scoped, tag = 'scoped memory for tpu_custom_call.1']
    #allocation5 [shape = 's32[1]{0}', space=sflag, size = 0x4, scoped, tag = 'scoped memory for tpu_custom_call.1']
    #allocation6 [shape = 's32[1]{0}', space=sflag, size = 0x4, scoped, tag = 'scoped memory for tpu_custom_call.1']
    #allocation7 [shape = 'u8[1024]{0}', space=vmem, size = 0x400, scoped, tag = 'input window, operand 3, single buffered']
    #allocation8 [shape = 'u8[1024]{0}', space=vmem, size = 0x400, scoped, tag = 'output window, operand 0, single buffered']
    %10 = vsyncpa [#allocation6], 0
    %11 = vsyncpa [#allocation4], 0
    %12 = vsyncpa [#allocation5], 0
    // Predicated region
    $region2: #{tpu_custom_call.1} parent=1 // pred_check
      _
    $region3: #{tpu_custom_call.1} parent=1 // pred_check_branch
      %14 = sbr.rel (0) target = $region5
    $region4: #{tpu_custom_call.1} parent=1 // pred_region
      %16 = vsyncadd [#allocation6], 0
      %s18 = sshll.u32 %s0, 4
      %s19 = int_to_ptr.hbm [resolvable:$true] %s18
      %21 = dma.hbm_to_smem %s19, 16, [#allocation3], [#allocation6]
    $region5: #{tpu_custom_call.1} parent=1 // pred_fallthru
      _
    // Predicated region
    $region6: #{tpu_custom_call.1} parent=1 // pred_check
      _
    $region7: #{tpu_custom_call.1} parent=1 // pred_check_branch
      %23 = sbr.rel (0) target = $region9
    $region8: #{tpu_custom_call.1} parent=1 // pred_region
      _
    $region9: #{tpu_custom_call.1} parent=1 // pred_fallthru
      _
    // Predicated region
    $region10: #{tpu_custom_call.1} parent=1 // pred_check
      _
    $region11: #{tpu_custom_call.1} parent=1 // pred_check_branch
      %25 = sbr.rel (0) target = $region13
    $region12: #{tpu_custom_call.1} parent=1 // pred_region
      _
    $region13: #{tpu_custom_call.1} parent=1 // pred_fallthru
      _
    // Predicated region
    $region14: #{tpu_custom_call.1} parent=1 // pred_check
      _
    $region15: #{tpu_custom_call.1} parent=1 // pred_check_branch
      %27 = sbr.rel (0) target = $region17
    $region16: #{tpu_custom_call.1} parent=1 // pred_region
      %29 = vsyncadd [#allocation4], 0
      %s31 = sshll.u32 %s3, 4
      %s32 = int_to_ptr.hbm [resolvable:$true] %s31
      %s33 = sshll.u32 [#allocation7], 4
      %s34 = int_to_ptr.vmem [resolvable:$true] %s33
      %36 = dma.hbm_to_vmem [thread:$0]  %s32, 32, %s34, [#allocation4]
    $region17: #{tpu_custom_call.1} parent=1 // pred_fallthru
      _
    // Predicated region
    $region18: #{tpu_custom_call.1} parent=1 // pred_check
      _
    $region19: #{tpu_custom_call.1} parent=1 // pred_check_branch
      %38 = sbr.rel (0) target = $region21
    $region20: #{tpu_custom_call.1} parent=1 // pred_region
      %40 = dma.done [#allocation6], 16
    $region21: #{tpu_custom_call.1} parent=1 // pred_fallthru
      _
    // Predicated region
    $region22: #{tpu_custom_call.1} parent=1 // pred_check
      _
    $region23: #{tpu_custom_call.1} parent=1 // pred_check_branch
      %42 = sbr.rel (0) target = $region25
    $region24: #{tpu_custom_call.1} parent=1 // pred_region
      %44 = dma.done [#allocation4], 32
    $region25: #{tpu_custom_call.1} parent=1 // pred_fallthru
      _
    %45 = sfence
    %s46 = sld [smem:[#allocation3]]
    %s47 = sld [smem:[#allocation3 + $0x1]]
    %s48 = sld [smem:[#allocation2]]
    %v49 = vld [vmem:[%s2] sm:$0x3]
    %v50 = vld [vmem:[#allocation7] sm:$0x3]
    %v51 = vstv %s46
    %v52 = vmul.f32 %v49, %v51
    %v53 = vstv %s47
    %v54 = vmul.f32 %v50, %v53
    %v55 = vadd.f32 %v52, %v54
    %v56 = vstv %s48
    %v57 = vadd.f32 %v55, %v56
    %v58 = vmul.f32 %v57, 0.5
    %v59 = vtanh.pop %v58
    %v60 = vmul.f32 %v59, 0.5
    %v61 = vadd.f32 %v60, 0.5
    %v62 = vsub.f32 %v49, %v50
    %v63 = vmul.f32 %v61, %v62
    %v64 = vadd.f32 %v50, %v63
    %65 = vst [vmem:[#allocation8] sm:$0x3] %v64
    // Predicated region
    $region26: #{tpu_custom_call.1} parent=1 // pred_check
      _
    $region27: #{tpu_custom_call.1} parent=1 // pred_check_branch
      %67 = sbr.rel (0) target = $region29
    $region28: #{tpu_custom_call.1} parent=1 // pred_region
      %69 = vsyncadd [#allocation5], 0
      %s71 = sshll.u32 [#allocation8], 4
      %s72 = int_to_ptr.vmem [resolvable:$true] %s71
      %s73 = sshll.u32 %s4, 4
      %s74 = int_to_ptr.hbm [resolvable:$true] %s73
      %76 = dma.vmem_to_hbm [thread:$0]  %s72, 32, %s74, [#allocation5]
    $region29: #{tpu_custom_call.1} parent=1 // pred_fallthru
      _
    // Predicated region
    $region30: #{tpu_custom_call.1} parent=1 // pred_check
      _
    $region31: #{tpu_custom_call.1} parent=1 // pred_check_branch
      %78 = sbr.rel (0) target = $region33
    $region32: #{tpu_custom_call.1} parent=1 // pred_region
      %80 = dma.done [#allocation5], 32
    $region33: #{tpu_custom_call.1} parent=1 // pred_fallthru
      _
    %81 = vsyncpa [#allocation4], 1
    %82 = vsyncpa [#allocation5], 1
    %83 = vsyncpa [#allocation6], 1

</llo_original>
